<compile_context>
chip_gen: v7x
topology: tpu7x:2x2x1
jax: 0.10.0
libtpu: 0.0.40
codegen_flags: <defaults>
</compile_context>

<pallas_src>
import jax
import jax.numpy as jnp
from jax.experimental import pallas as pl
from jax.experimental.pallas import tpu as pltpu


def _preprocess_kernel(range_ref, pts_ref, mask_ref, out_ref):
    """range_ref: (6,)   f32 in SMEM  [x_min, y_min, z_min, x_max, y_max, z_max]
       pts_ref:   (C, T) f32 in VMEM  (feature-major tile, T points on lanes)
       mask_ref:  (1, T) i32 in VMEM  (1 = inside range, 0 = outside)
       out_ref:   (C+1, T) f32 in VMEM (row 0 is the zero pad; rows 1.. are the
                                        masked features; invalid points zeroed)
    """
    pts = pts_ref[...]                      # (C, T)
    x = pts[0:1, :]                         # (1, T) — cheap sublane rows
    y = pts[1:2, :]
    z = pts[2:3, :]

    x_min = range_ref[0]
    y_min = range_ref[1]
    z_min = range_ref[2]
    x_max = range_ref[3]
    y_max = range_ref[4]
    z_max = range_ref[5]

    mask = ((x >= x_min) & (x <= x_max)
            & (y >= y_min) & (y <= y_max)
            & (z >= z_min) & (z <= z_max))  # (1, T) bool, lane-dense

    mask_ref[...] = mask.astype(jnp.int32)

    mask_f = mask.astype(pts.dtype)         # (1, T), broadcasts over features
    # Direct slice stores — no concatenate temporary; lane dim stays dense.
    out_ref[0:1, :] = jnp.zeros_like(x)     # padded leading zero row
    out_ref[1:, :] = pts * mask_f           # zero out rows outside the range


def _round_up(x, m):
    return ((x + m - 1) // m) * m


def data_processor_forward(points, point_cloud_range, *, tile=1024):
    """points: (N, C) float32, C >= 3.  point_cloud_range: (6,) float32.

    Returns:
      compacted: (N, C+1) — valid points (zero-padded leading column) moved to
                 the front in their original order; trailing rows are zeros.
      num_valid: () int32 — how many rows of `compacted` are real points.
      mask:      (N,) bool — per-point inside-range mask.
    """
    N, C = points.shape
    points = points.astype(jnp.float32)

    # Lane tile: multiple of 128, capped so per-block VMEM stays a few MiB
    # (safe on v7x's smaller VMEM); N is padded up to a tile multiple.
    tile = min(tile, _round_up(max(N, 1), 128))
    n_pad = _round_up(max(N, 1), tile)

    pts_t = jnp.transpose(points)                       # (C, N) feature-major
    if n_pad != N:
        pts_t = jnp.pad(pts_t, ((0, 0), (0, n_pad - N)))

    grid = (n_pad // tile,)
    bytes_accessed = n_pad * (C + (C + 1) + 1) * 4      # read pts + write out + mask

    mask_t, padded_t = pl.pallas_call(
        _preprocess_kernel,
        out_shape=(
            jax.ShapeDtypeStruct((1, n_pad), jnp.int32),
            jax.ShapeDtypeStruct((C + 1, n_pad), points.dtype),
        ),
        grid=grid,
        in_specs=[
            pl.BlockSpec(memory_space=pltpu.MemorySpace.SMEM),       # range scalars
            pl.BlockSpec((C, tile), lambda i: (0, i)),               # (C, T) tile
        ],
        out_specs=(
            pl.BlockSpec((1, tile), lambda i: (0, i)),               # mask
            pl.BlockSpec((C + 1, tile), lambda i: (0, i)),           # padded features
        ),
        compiler_params=pltpu.CompilerParams(
            dimension_semantics=("parallel",)),
        cost_estimate=pl.CostEstimate(
            flops=0, transcendentals=0, bytes_accessed=bytes_accessed),
    )(point_cloud_range.astype(jnp.float32), pts_t)

    mask = mask_t[0, :N] != 0                            # (N,) bool
    padded = jnp.transpose(padded_t)[:N]                 # (N, C+1) row layout

    # TODO(synk): torch's `points[mask]` returns a dynamically-shaped tensor;
    # here we compact valid rows to the front of a fixed-size buffer instead.
    # O(N) cumsum scatter (replaces the previous O(N log N) argsort).
    valid_i32 = mask.astype(jnp.int32)
    num_valid = jnp.sum(valid_i32)
    dest = jnp.where(mask, jnp.cumsum(valid_i32) - 1, N)  # invalid rows -> dropped
    compacted = jnp.zeros((N, C + 1), padded.dtype).at[dest].set(padded, mode="drop")
    return compacted, num_valid, mask


if __name__ == "__main__":
    key = jax.random.PRNGKey(0)
    N, C = 64, 4
    k_xyz, k_int = jax.random.split(key)
    xyz = jax.random.uniform(k_xyz, (N, 3), dtype=jnp.float32,
                             minval=-60.0, maxval=60.0)
    intensity = jax.random.uniform(k_int, (N, 1), dtype=jnp.float32)
    points = jnp.concatenate([xyz, intensity], axis=1)           # (N, 4)

    # Typical LiDAR point-cloud range: [x_min, y_min, z_min, x_max, y_max, z_max]
    point_cloud_range = jnp.array([-50.0, -50.0, -3.0, 50.0, 50.0, 1.0],
                                  dtype=jnp.float32)

    compacted, num_valid, mask = data_processor_forward(points, point_cloud_range)
    compacted = jax.block_until_ready(compacted)
    num_valid = int(jax.block_until_ready(num_valid))

    # Pure-JAX reference check of the semantics.
    ref_mask = ((points[:, 0] >= point_cloud_range[0]) & (points[:, 0] <= point_cloud_range[3])
                & (points[:, 1] >= point_cloud_range[1]) & (points[:, 1] <= point_cloud_range[4])
                & (points[:, 2] >= point_cloud_range[2]) & (points[:, 2] <= point_cloud_range[5]))
    ref_valid = points[ref_mask]                                  # host-side dynamic shape is fine here
    ref_padded = jnp.concatenate(
        [jnp.zeros((ref_valid.shape[0], 1), ref_valid.dtype), ref_valid], axis=1)

    assert num_valid == ref_padded.shape[0]
    assert bool(jnp.all(mask == ref_mask))
    assert bool(jnp.allclose(compacted[:num_valid], ref_padded))
    assert bool(jnp.all(compacted[num_valid:] == 0.0))

    print("KERNEL_OK")
</pallas_src>

<mosaic_0001>
module attributes {stable_mosaic.version = 11 : i64} {
  func.func @_preprocess_kernel(%arg0: i32, %arg1: memref<6xf32, #tpu.memory_space<smem>>, %arg2: memref<4x128xf32, #tpu.memory_space<vmem>>, %arg3: memref<1x128xi32, #tpu.memory_space<vmem>>, %arg4: memref<5x128xf32, #tpu.memory_space<vmem>>) attributes {dimension_semantics = [#tpu.dimension_semantics<parallel>], iteration_bounds = array<i64: 1>, scalar_prefetch = 0 : i64, scratch_operands = 0 : i64, tpu.core_type = #tpu.core_type<tc>, window_params = [{transform_indices = @transform_0, window_bounds = array<i64: 6>}, {transform_indices = @transform_1, window_bounds = array<i64: 4, 128>}, {transform_indices = @transform_2, window_bounds = array<i64: 1, 128>}, {transform_indices = @transform_3, window_bounds = array<i64: 5, 128>}]} {
    %c0 = arith.constant 0 : index
    %c0_0 = arith.constant 0 : index
    %0 = vector.load %arg2[%c0, %c0_0] : memref<4x128xf32, #tpu.memory_space<vmem>>, vector<4x128xf32>
    %1 = vector.extract_strided_slice %0 {offsets = [0, 0], sizes = [1, 128], strides = [1, 1]} : vector<4x128xf32> to vector<1x128xf32>
    %2 = vector.extract_strided_slice %0 {offsets = [1, 0], sizes = [1, 128], strides = [1, 1]} : vector<4x128xf32> to vector<1x128xf32>
    %3 = vector.extract_strided_slice %0 {offsets = [2, 0], sizes = [1, 128], strides = [1, 1]} : vector<4x128xf32> to vector<1x128xf32>
    %c0_1 = arith.constant 0 : index
    %4 = memref.load %arg1[%c0_1] : memref<6xf32, #tpu.memory_space<smem>>
    %c1 = arith.constant 1 : index
    %5 = memref.load %arg1[%c1] : memref<6xf32, #tpu.memory_space<smem>>
    %c2 = arith.constant 2 : index
    %6 = memref.load %arg1[%c2] : memref<6xf32, #tpu.memory_space<smem>>
    %c3 = arith.constant 3 : index
    %7 = memref.load %arg1[%c3] : memref<6xf32, #tpu.memory_space<smem>>
    %c4 = arith.constant 4 : index
    %8 = memref.load %arg1[%c4] : memref<6xf32, #tpu.memory_space<smem>>
    %c5 = arith.constant 5 : index
    %9 = memref.load %arg1[%c5] : memref<6xf32, #tpu.memory_space<smem>>
    %10 = vector.broadcast %4 : f32 to vector<1x128xf32>
    %11 = arith.cmpf oge, %1, %10 : vector<1x128xf32>
    %12 = vector.broadcast %7 : f32 to vector<1x128xf32>
    %13 = arith.cmpf ole, %1, %12 : vector<1x128xf32>
    %14 = arith.andi %11, %13 : vector<1x128xi1>
    %15 = vector.broadcast %5 : f32 to vector<1x128xf32>
    %16 = arith.cmpf oge, %2, %15 : vector<1x128xf32>
    %17 = arith.andi %14, %16 : vector<1x128xi1>
    %18 = vector.broadcast %8 : f32 to vector<1x128xf32>
    %19 = arith.cmpf ole, %2, %18 : vector<1x128xf32>
    %20 = arith.andi %17, %19 : vector<1x128xi1>
    %21 = vector.broadcast %6 : f32 to vector<1x128xf32>
    %22 = arith.cmpf oge, %3, %21 : vector<1x128xf32>
    %23 = arith.andi %20, %22 : vector<1x128xi1>
    %24 = vector.broadcast %9 : f32 to vector<1x128xf32>
    %25 = arith.cmpf ole, %3, %24 : vector<1x128xf32>
    %26 = arith.andi %23, %25 : vector<1x128xi1>
    %27 = arith.extui %26 : vector<1x128xi1> to vector<1x128xi32>
    %c0_2 = arith.constant 0 : index
    %c0_3 = arith.constant 0 : index
    %28 = vector.load %arg3[%c0_2, %c0_3] : memref<1x128xi32, #tpu.memory_space<vmem>>, vector<1x128xi32>
    tpu.vector_store %arg3[%c0_2, %c0_3], %27 {strides = array<i32>} : memref<1x128xi32, #tpu.memory_space<vmem>>, vector<1x128xi32>,
    %29 = arith.extui %26 : vector<1x128xi1> to vector<1x128xi32>
    %30 = arith.sitofp %29 : vector<1x128xi32> to vector<1x128xf32>
    %cst = arith.constant 0.000000e+00 : f32
    %31 = vector.broadcast %cst : f32 to vector<1x128xf32>
    %c0_4 = arith.constant 0 : index
    %c0_5 = arith.constant 0 : index
    %32 = vector.load %arg4[%c0_4, %c0_5] : memref<5x128xf32, #tpu.memory_space<vmem>>, vector<1x128xf32>
    tpu.vector_store %arg4[%c0_4, %c0_5], %31 {strides = array<i32>} : memref<5x128xf32, #tpu.memory_space<vmem>>, vector<1x128xf32>,
    %33 = vector.broadcast %30 : vector<1x128xf32> to vector<4x128xf32>
    %34 = arith.mulf %0, %33 : vector<4x128xf32>
    %c1_6 = arith.constant 1 : index
    %c0_7 = arith.constant 0 : index
    %35 = vector.load %arg4[%c1_6, %c0_7] : memref<5x128xf32, #tpu.memory_space<vmem>>, vector<4x128xf32>
    tpu.vector_store %arg4[%c1_6, %c0_7], %34 {strides = array<i32>} : memref<5x128xf32, #tpu.memory_space<vmem>>, vector<4x128xf32>,
    return
  }
  func.func @transform_0(%arg0: i32) -> i32 {
    %c0_i32 = arith.constant 0 : i32
    %c0_i32_0 = arith.constant 0 : i32
    return %c0_i32 : i32
  }
  func.func @transform_1(%arg0: i32) -> (i32, i32) {
    %c0_i32 = arith.constant 0 : i32
    %c0_i32_0 = arith.constant 0 : i32
    return %c0_i32, %arg0 : i32, i32
  }
  func.func @transform_2(%arg0: i32) -> (i32, i32) {
    %c0_i32 = arith.constant 0 : i32
    %c0_i32_0 = arith.constant 0 : i32
    return %c0_i32, %arg0 : i32, i32
  }
  func.func @transform_3(%arg0: i32) -> (i32, i32) {
    %c0_i32 = arith.constant 0 : i32
    %c0_i32_0 = arith.constant 0 : i32
    return %c0_i32, %arg0 : i32, i32
  }
}

</mosaic_0001>

<llo_original>
// kernel: tpu_custom_call.1
$region0: #{tpu_custom_call.1}
  #allocation0 [shape = 'u32[]', space=smem, size = 0x4, offset = 0x4, fixed_abs, tag = 'smem constant byte address 0x4 - core index']
  #allocation1 [shape = 'u32[144,128]{1,0:T(1,128)}', space=vmem, size = 0x12000, scoped, tag = 'internal scratch']
  %s0 = inlined_call_operand.hbm [shape: f32[6], index: 0, kind: input, shape index: {}]
  %s1 = inlined_call_operand.hbm [shape: f32[4,128], index: 1, kind: input, shape index: {}]
  %s2 = inlined_call_operand.hbm [shape: s32[1,128], index: 2, kind: output, shape index: {0}]
  %s3 = inlined_call_operand.hbm [shape: f32[5,128], index: 3, kind: output, shape index: {1}]
  %4 = xla_tuple %s2, %s3
  %s5 = sld [smem:[#allocation0]]
  $region34: #{tpu_custom_call.1} parent=0
    _
  %s7 = ssub.s32 1, %s5
  %s8 = scalar_select 0, %s7, %s5
  $region1: #{tpu_custom_call.1} parent=0
    #allocation2 [shape = 'u8[512]{0}', space=smem, size = 0x200, scoped, tag = 'input window, operand 0, single buffered']
    #allocation3 [shape = 's32[1]{0}', space=sflag, size = 0x4, scoped, tag = 'scoped memory for tpu_custom_call.1']
    #allocation4 [shape = 's32[1]{0}', space=sflag, size = 0x4, scoped, tag = 'scoped memory for tpu_custom_call.1']
    #allocation5 [shape = 's32[1]{0}', space=sflag, size = 0x4, scoped, tag = 'scoped memory for tpu_custom_call.1']
    #allocation6 [shape = 'u8[2048]{0}', space=vmem, size = 0x800, scoped, tag = 'input window, operand 1, single buffered']
    #allocation7 [shape = 'u8[512]{0}', space=vmem, size = 0x400, scoped, tag = 'output window, operand 0, single buffered']
    #allocation8 [shape = 'u8[4096]{0}', space=vmem, size = 0x1000, scoped, tag = 'output window, operand 1, single buffered']
    #allocation9 [shape = 's32[1]{0}', space=sflag, size = 0x4, scoped, tag = 'scoped memory for tpu_custom_call.1']
    %9 = vsyncpa [#allocation5], 0
    %10 = vsyncpa [#allocation3], 0
    %11 = vsyncpa [#allocation4], 0
    %12 = vsyncpa [#allocation9], 0
    // Predicated region
    $region2: #{tpu_custom_call.1} parent=1 // pred_check
      _
    $region3: #{tpu_custom_call.1} parent=1 // pred_check_branch
      %14 = sbr.rel (0) target = $region5
    $region4: #{tpu_custom_call.1} parent=1 // pred_region
      %s16 = ssub.s32 16, 16
      %17 = vsyncadd [#allocation5], %s16
      %20 = dma.hbm_to_smem %s0, 16, [#allocation2], [#allocation5]
    $region5: #{tpu_custom_call.1} parent=1 // pred_fallthru
      _
    // Predicated region
    $region6: #{tpu_custom_call.1} parent=1 // pred_check
      _
    $region7: #{tpu_custom_call.1} parent=1 // pred_check_branch
      %22 = sbr.rel (0) target = $region9
    $region8: #{tpu_custom_call.1} parent=1 // pred_region
      %s24 = ssub.s32 64, 64
      %25 = vsyncadd [#allocation3], %s24
      %s27 = sshll.u32 [#allocation6], 4
      %s28 = int_to_ptr.vmem [resolvable:$true] %s27
      %30 = dma.hbm_to_vmem [thread:$0]  %s1, 64, %s28, [#allocation3]
    $region9: #{tpu_custom_call.1} parent=1 // pred_fallthru
      _
    // Predicated region
    $region10: #{tpu_custom_call.1} parent=1 // pred_check
      _
    $region11: #{tpu_custom_call.1} parent=1 // pred_check_branch
      %32 = sbr.rel (0) target = $region13
    $region12: #{tpu_custom_call.1} parent=1 // pred_region
      %33 = dma.done [#allocation5], 16
    $region13: #{tpu_custom_call.1} parent=1 // pred_fallthru
      _
    // Predicated region
    $region14: #{tpu_custom_call.1} parent=1 // pred_check
      _
    $region15: #{tpu_custom_call.1} parent=1 // pred_check_branch
      %35 = sbr.rel (0) target = $region17
    $region16: #{tpu_custom_call.1} parent=1 // pred_region
      %36 = dma.done [#allocation3], 64
    $region17: #{tpu_custom_call.1} parent=1 // pred_fallthru
      _
    %37 = sfence
    %v38 = vld [vmem:[#allocation6] sm:$0xf]
    %s39 = sld [smem:[#allocation2]]
    %s40 = sld [smem:[#allocation2 + $0x1]]
    %s41 = sld [smem:[#allocation2 + $0x2]]
    %s42 = sld [smem:[#allocation2 + $0x3]]
    %s43 = sld [smem:[#allocation2 + $0x4]]
    %s44 = sld [smem:[#allocation2 + $0x5]]
    %v45 = vstv %s39
    %vm46 = vcmp.ge.f32.partialorder %v38, %v45
    %v47 = vstv %s42
    %vm48 = vcmp.le.f32.partialorder %v38, %v47
    %vm49 = vmand %vm46, %vm48
    %v50 = vstv %s40
    %vm51 = vcmp.ge.f32.partialorder %v38, %v50
    %v52 = vsel %vm51, 1, 0
    %v53 = vrot.slane %v52, 1
    %vm54 = vcmp.ne.s32.totalorder %v53, 0
    %vm55 = vmand %vm49, %vm54
    %v56 = vstv %s43
    %vm57 = vcmp.le.f32.partialorder %v38, %v56
    %v58 = vsel %vm57, 1, 0
    %v59 = vrot.slane %v58, 1
    %vm60 = vcmp.ne.s32.totalorder %v59, 0
    %vm61 = vmand %vm55, %vm60
    %v62 = vstv %s41
    %vm63 = vcmp.ge.f32.partialorder %v38, %v62
    %v64 = vsel %vm63, 1, 0
    %v65 = vrot.slane %v64, 2
    %vm66 = vcmp.ne.s32.totalorder %v65, 0
    %vm67 = vmand %vm61, %vm66
    %v68 = vstv %s44
    %vm69 = vcmp.le.f32.partialorder %v38, %v68
    %v70 = vsel %vm69, 1, 0
    %v71 = vrot.slane %v70, 2
    %vm72 = vcmp.ne.s32.totalorder %v71, 0
    %vm73 = vmand %vm67, %vm72
    %v74 = vsel %vm73, 1, 0
    %75 = vst [vmem:[#allocation7] sm:$0x1] %v74
    %v76 = vcvt.s32.f32 %v74
    %77 = vst [vmem:[#allocation8] sm:$0x1] 0.0
    %v78 = vlaneseq
    %v79 = vshrl.u32 %v78, 7
    %v80 = vsub.s32 0, %v79
    %v81 = vrot.slane %v76, %v80
    %v82 = vmul.f32 %v38, %v81
    %83 = vst [vmem:[#allocation8 + $0x1] sm:$0xf] %v82
    // Predicated region
    $region18: #{tpu_custom_call.1} parent=1 // pred_check
      _
    $region19: #{tpu_custom_call.1} parent=1 // pred_check_branch
      %85 = sbr.rel (0) target = $region21
    $region20: #{tpu_custom_call.1} parent=1 // pred_region
      %s87 = ssub.s32 16, 16
      %88 = vsyncadd [#allocation4], %s87
      %s90 = sshll.u32 [#allocation7], 4
      %s91 = int_to_ptr.vmem [resolvable:$true] %s90
      %93 = dma.vmem_to_hbm [thread:$0]  %s91, 16, %s2, [#allocation4]
    $region21: #{tpu_custom_call.1} parent=1 // pred_fallthru
      _
    // Predicated region
    $region22: #{tpu_custom_call.1} parent=1 // pred_check
      _
    $region23: #{tpu_custom_call.1} parent=1 // pred_check_branch
      %95 = sbr.rel (0) target = $region25
    $region24: #{tpu_custom_call.1} parent=1 // pred_region
      %s97 = ssub.s32 128, 128
      %98 = vsyncadd [#allocation9], %s97
      %s100 = sshll.u32 [#allocation8], 4
      %s101 = int_to_ptr.vmem [resolvable:$true] %s100
      %103 = dma.vmem_to_hbm [thread:$0]  %s101, 128, %s3, [#allocation9]
    $region25: #{tpu_custom_call.1} parent=1 // pred_fallthru
      _
    // Predicated region
    $region26: #{tpu_custom_call.1} parent=1 // pred_check
      _
    $region27: #{tpu_custom_call.1} parent=1 // pred_check_branch
      %105 = sbr.rel (0) target = $region29
    $region28: #{tpu_custom_call.1} parent=1 // pred_region
      %106 = dma.done [#allocation4], 16
    $region29: #{tpu_custom_call.1} parent=1 // pred_fallthru
      _
    // Predicated region
    $region30: #{tpu_custom_call.1} parent=1 // pred_check
      _
    $region31: #{tpu_custom_call.1} parent=1 // pred_check_branch
      %108 = sbr.rel (0) target = $region33
    $region32: #{tpu_custom_call.1} parent=1 // pred_region
      %109 = dma.done [#allocation9], 128
    $region33: #{tpu_custom_call.1} parent=1 // pred_fallthru
      _
    %110 = vsyncpa [#allocation3], 1
    %111 = vsyncpa [#allocation4], 1
    %112 = vsyncpa [#allocation9], 1
    %113 = vsyncpa [#allocation5], 1

</llo_original>
